<compile_context>
chip_gen: v6e
topology: v6e:2x2x1
jax: 0.10.0
libtpu: 0.0.40
codegen_flags: <defaults>
</compile_context>

<pallas_src>
import jax
import jax.numpy as jnp
from jax.experimental import pallas as pl
from jax.experimental.pallas import tpu as pltpu


# --------------------------------------------------------------------------- #
# Kernel
# --------------------------------------------------------------------------- #
def _make_kernel(C):
    def kernel(logits_ref, tgt_ref, counts_out_ref, nll_out_ref,
               counts_acc, nll_acc):
        k = pl.program_id(2)

        @pl.when(k == 0)
        def _init():
            counts_acc[...] = jnp.zeros_like(counts_acc)
            nll_acc[...] = jnp.zeros_like(nll_acc)

        # ---- per-tile work -------------------------------------------------
        x = logits_ref[0].astype(jnp.float32)                  # (C, TP) f32
        t = tgt_ref[0].astype(jnp.int32)                       # (1, TP) int32

        # (C,1) iota broadcasts inside the compare -> no (C,TP) int temp.
        cls = jax.lax.broadcasted_iota(jnp.int32, (C, 1), 0)   # (C, 1)
        one_hot = (cls == t).astype(jnp.float32)               # (C, TP)

        m = jnp.max(x, axis=0, keepdims=True)                  # (1, TP)
        lse = m + jnp.log(jnp.sum(jnp.exp(x - m), axis=0, keepdims=True))

        # Per-tile cross-lane reduces into tiny (C,1) accumulators.
        # sum_p one_hot*(lse - x) == sum_{p: t_p=c} (lse_p - x[t_p, p])  (the NLL).
        counts_acc[...] += jnp.sum(one_hot, axis=1, keepdims=True)
        nll_acc[...] += jnp.sum(one_hot * (lse - x), axis=1, keepdims=True)

        # ---- per-(split, sample) writeback ---------------------------------
        @pl.when(k == pl.num_programs(2) - 1)
        def _store():
            counts_out_ref[0, 0] = counts_acc[...]             # (C, 1)
            nll_out_ref[0, 0] = nll_acc[...]                   # (C, 1)

    return kernel


# --------------------------------------------------------------------------- #
# Tile-size selection (generation-aware VMEM budget)
# --------------------------------------------------------------------------- #
def _vmem_budget_bytes():
    """Scoped-VMEM budget with headroom below physical capacity."""
    phys = 128 * 1024 * 1024
    try:
        info = pltpu.get_tpu_info()
        phys = int(getattr(info, "vmem_capacity_bytes", phys))
    except Exception:
        pass
    if phys <= 64 * 1024 * 1024:          # v7x-class: 64 MiB per TensorCore
        return 40 * 1024 * 1024
    return 80 * 1024 * 1024               # v5e / v6e: 128 MiB


def _tp_cap(C, logit_bytes, vmem_budget):
    """Largest pixel-tile (lanes) whose estimated VMEM use fits the budget."""
    # Per lane of TP:
    #   2 * C * logit_bytes   double-buffered logits stream
    #   2 * 4                 double-buffered targets (<= int32)
    #   6 * C * 4             ~6 f32 (C,TP) Mosaic temps (x, one_hot, lse-x, ...)
    #   6 * 4                 small (1,TP) temps (m, lse, t, ...)
    per_lane = 2 * C * logit_bytes + 8 + 6 * C * 4 + 24
    cap = int(0.7 * vmem_budget) // per_lane      # 30% slack for misestimation
    cap = min(cap, 256 * 1024)                    # sanity cap
    return max(128, (cap // 128) * 128)


def _largest_div_tile(P, cap):
    """Largest multiple of 128 <= cap that divides P (None if no such tile)."""
    tp = min(cap, (P // 128) * 128)
    while tp >= 128:
        if P % tp == 0:
            return tp
        tp -= 128
    return None


def _choose_tiling(P, C, logit_bytes, vmem_budget, B):
    cap = _tp_cap(C, logit_bytes, vmem_budget)

    # With a single sample, split the pixel axis in two so both TensorCores
    # (v7x / megacore) get work; requires a mult-of-128 tile dividing P/2.
    if B == 1 and P % 256 == 0:
        tp = _largest_div_tile(P // 2, cap)
        if tp is not None:
            return tp, 2

    if P <= cap:
        return P, 1
    tp = _largest_div_tile(P, cap)
    if tp is not None:
        return tp, 1
    # TODO(synk): P larger than the VMEM cap and not divisible by 128 falls
    # back to one big tile; add in-kernel lane masking for ragged last tiles.
    return P, 1


# --------------------------------------------------------------------------- #
# Wrapper
# --------------------------------------------------------------------------- #
def instance_weighted_ce_loss(logits_nchw, targets_nhw, num_classes, smooth=0.6,
                              tile_p=None, n_split=None):
    """logits_nchw: [B, C, H, W] (any float dtype), targets_nhw: [B, H, W] int."""
    B, C, H, W = logits_nchw.shape
    assert C == num_classes
    P = H * W

    budget = _vmem_budget_bytes()
    logit_bytes = jnp.dtype(logits_nchw.dtype).itemsize
    auto_tp, auto_split = _choose_tiling(P, C, logit_bytes, budget, B)
    TP = auto_tp if tile_p is None else tile_p
    S = auto_split if n_split is None else n_split
    assert (TP == P and S == 1) or (P % TP == 0 and TP % 128 == 0)
    k_total = P // TP
    assert k_total % S == 0
    k_split = k_total // S

    # Keep logits in their native HBM dtype (bf16 stays bf16); upcast in-kernel.
    logits = logits_nchw.reshape(B, C, P)
    targets = targets_nhw.reshape(B, 1, P)
    if not jnp.issubdtype(targets.dtype, jnp.integer):
        targets = targets.astype(jnp.int32)   # only cast if not already integer

    counts_out, nll_out = pl.pallas_call(
        _make_kernel(C),
        out_shape=(
            jax.ShapeDtypeStruct((S, B, C, 1), jnp.float32),
            jax.ShapeDtypeStruct((S, B, C, 1), jnp.float32),
        ),
        grid=(S, B, k_split),
        in_specs=[
            pl.BlockSpec((1, C, TP), lambda s, b, k: (b, 0, s * k_split + k)),
            pl.BlockSpec((1, 1, TP), lambda s, b, k: (b, 0, s * k_split + k)),
        ],
        out_specs=(
            pl.BlockSpec((1, 1, C, 1), lambda s, b, k: (s, b, 0, 0)),
            pl.BlockSpec((1, 1, C, 1), lambda s, b, k: (s, b, 0, 0)),
        ),
        scratch_shapes=[
            pltpu.VMEM((C, 1), jnp.float32),   # per-class pixel counts
            pltpu.VMEM((C, 1), jnp.float32),   # per-class NLL partial sums
        ],
        compiler_params=pltpu.CompilerParams(
            dimension_semantics=("parallel", "parallel", "arbitrary"),
            vmem_limit_bytes=budget,
        ),
    )(logits, targets)

    # ---- tiny O(B*C) glue: instance weighting, per-sample divide, batch mean
    counts = counts_out[..., 0].sum(axis=0)                        # (B, C)
    nll = nll_out[..., 0].sum(axis=0)                              # (B, C)
    w = 1.0 - counts / counts.sum(axis=1, keepdims=True)
    w = w * (1.0 - smooth) + w.mean(axis=1, keepdims=True) * smooth
    num = (w * nll).sum(axis=1)
    den = (w * counts).sum(axis=1)
    return jnp.mean(num / den)


# --------------------------------------------------------------------------- #
# Pure-JAX reference (mirrors the PyTorch module) for validation
# --------------------------------------------------------------------------- #
def _reference(logits_nchw, targets_nhw, num_classes, smooth):
    B, C, H, W = logits_nchw.shape
    logits = logits_nchw.reshape(B, C, -1).astype(jnp.float32)
    tgt = targets_nhw.reshape(B, -1)
    one_hot = jax.nn.one_hot(tgt, C, axis=1)                       # [B, C, P]
    logp = jax.nn.log_softmax(logits, axis=1)
    counts = one_hot.sum(axis=2)                                   # [B, C]
    w = 1.0 - counts / counts.sum(axis=1, keepdims=True)
    w = w * (1.0 - smooth) + w.mean(axis=1, keepdims=True) * smooth
    num = (one_hot * w[:, :, None] * (-logp)).sum(axis=(1, 2))
    den = (one_hot * w[:, :, None]).sum(axis=(1, 2))
    return jnp.mean(num / den)


if __name__ == "__main__":
    B, C, H, W = 2, 4, 16, 16
    smooth = 0.6

    key = jax.random.PRNGKey(0)
    k1, k2, k3 = jax.random.split(key, 3)
    logits = jax.random.normal(k1, (B, C, H, W), dtype=jnp.float32)
    targets = jax.random.randint(k2, (B, H, W), 0, C, dtype=jnp.int32)

    loss = instance_weighted_ce_loss(logits, targets, num_classes=C, smooth=smooth)
    loss = jax.block_until_ready(loss)
    ref = _reference(logits, targets, C, smooth)
    assert jnp.allclose(loss, ref, rtol=1e-5, atol=1e-5), (float(loss), float(ref))

    # Also exercise the B==1 pixel-split (dual-TensorCore) path with bf16 logits.
    logits1 = jax.random.normal(k3, (1, C, H, W), dtype=jnp.bfloat16)
    targets1 = targets[:1]
    loss1 = jax.block_until_ready(
        instance_weighted_ce_loss(logits1, targets1, num_classes=C, smooth=smooth))
    ref1 = _reference(logits1, targets1, C, smooth)
    assert jnp.allclose(loss1, ref1, rtol=1e-4, atol=1e-4), (float(loss1), float(ref1))

    print("KERNEL_OK")
</pallas_src>

<mosaic_0001>
module attributes {stable_mosaic.version = 11 : i64} {
  func.func @kernel(%arg0: i32, %arg1: i32, %arg2: i32, %arg3: memref<1x4x256xf32, #tpu.memory_space<vmem>>, %arg4: memref<1x1x256xi32, #tpu.memory_space<vmem>>, %arg5: memref<1x1x4x1xf32, #tpu.memory_space<vmem>>, %arg6: memref<1x1x4x1xf32, #tpu.memory_space<vmem>>, %arg7: memref<4x1xf32, #tpu.memory_space<vmem>>, %arg8: memref<4x1xf32, #tpu.memory_space<vmem>>) attributes {dimension_semantics = [#tpu.dimension_semantics<parallel>, #tpu.dimension_semantics<parallel>, #tpu.dimension_semantics<arbitrary>], iteration_bounds = array<i64: 1, 2, 1>, scalar_prefetch = 0 : i64, scratch_operands = 2 : i64, tpu.core_type = #tpu.core_type<tc>, window_params = [{transform_indices = @transform_0, window_bounds = array<i64: 1, 4, 256>}, {transform_indices = @transform_1, window_bounds = array<i64: 1, 1, 256>}, {transform_indices = @transform_2, window_bounds = array<i64: 1, 1, 4, 1>}, {transform_indices = @transform_3, window_bounds = array<i64: 1, 1, 4, 1>}]} {
    %c0_i32 = arith.constant 0 : i32
    %0 = arith.cmpi eq, %arg2, %c0_i32 : i32
    %1 = arith.extui %0 : i1 to i32
    %c0_i32_0 = arith.constant 0 : i32
    %2 = arith.cmpi ne, %1, %c0_i32_0 : i32
    scf.if %2 {
      %cst_19 = arith.constant 0.000000e+00 : f32
      %38 = vector.broadcast %cst_19 : f32 to vector<4x1xf32>
      %c0_20 = arith.constant 0 : index
      %c0_21 = arith.constant 0 : index
      %39 = vector.load %arg7[%c0_20, %c0_21] : memref<4x1xf32, #tpu.memory_space<vmem>>, vector<4x1xf32>
      tpu.vector_store %arg7[%c0_20, %c0_21], %38 {strides = array<i32>} : memref<4x1xf32, #tpu.memory_space<vmem>>, vector<4x1xf32>,
      %cst_22 = arith.constant 0.000000e+00 : f32
      %40 = vector.broadcast %cst_22 : f32 to vector<4x1xf32>
      %c0_23 = arith.constant 0 : index
      %c0_24 = arith.constant 0 : index
      %41 = vector.load %arg8[%c0_23, %c0_24] : memref<4x1xf32, #tpu.memory_space<vmem>>, vector<4x1xf32>
      tpu.vector_store %arg8[%c0_23, %c0_24], %40 {strides = array<i32>} : memref<4x1xf32, #tpu.memory_space<vmem>>, vector<4x1xf32>,
    } else {
    }
    %c0 = arith.constant 0 : index
    %c0_1 = arith.constant 0 : index
    %c0_2 = arith.constant 0 : index
    %3 = vector.load %arg3[%c0, %c0_1, %c0_2] : memref<1x4x256xf32, #tpu.memory_space<vmem>>, vector<1x4x256xf32>
    %4 = vector.shape_cast %3 : vector<1x4x256xf32> to vector<4x256xf32>
    %c0_3 = arith.constant 0 : index
    %c0_4 = arith.constant 0 : index
    %c0_5 = arith.constant 0 : index
    %5 = vector.load %arg4[%c0_3, %c0_4, %c0_5] : memref<1x1x256xi32, #tpu.memory_space<vmem>>, vector<1x1x256xi32>
    %6 = vector.shape_cast %5 : vector<1x1x256xi32> to vector<1x256xi32>
    %7 = tpu.iota {dimensions = array<i32: 0>} : vector<4x1xi32>
    %8 = vector.broadcast %7 : vector<4x1xi32> to vector<4x256xi32>
    %9 = vector.broadcast %6 : vector<1x256xi32> to vector<4x256xi32>
    %10 = arith.cmpi eq, %8, %9 : vector<4x256xi32>
    %11 = arith.extui %10 : vector<4x256xi1> to vector<4x256xi32>
    %12 = arith.sitofp %11 : vector<4x256xi32> to vector<4x256xf32>
    %cst = arith.constant dense<0xFF800000> : vector<256xf32>
    %13 = vector.multi_reduction <maximumf>, %4, %cst [0] : vector<4x256xf32> to vector<256xf32>
    %14 = vector.shape_cast %13 : vector<256xf32> to vector<1x256xf32>
    %15 = vector.broadcast %14 : vector<1x256xf32> to vector<4x256xf32>
    %16 = arith.subf %4, %15 : vector<4x256xf32>
    %17 = math.exp %16 : vector<4x256xf32>
    %cst_6 = arith.constant dense<0.000000e+00> : vector<256xf32>
    %18 = vector.multi_reduction <add>, %17, %cst_6 [0] : vector<4x256xf32> to vector<256xf32>
    %19 = vector.shape_cast %18 : vector<256xf32> to vector<1x256xf32>
    %20 = math.log %19 : vector<1x256xf32>
    %21 = arith.addf %14, %20 : vector<1x256xf32>
    %c0_7 = arith.constant 0 : index
    %c0_8 = arith.constant 0 : index
    %22 = vector.load %arg7[%c0_7, %c0_8] : memref<4x1xf32, #tpu.memory_space<vmem>>, vector<4x1xf32>
    %cst_9 = arith.constant dense<0.000000e+00> : vector<4xf32>
    %23 = vector.multi_reduction <add>, %12, %cst_9 [1] : vector<4x256xf32> to vector<4xf32>
    %24 = vector.shape_cast %23 : vector<4xf32> to vector<4x1xf32>
    %25 = arith.addf %22, %24 : vector<4x1xf32>
    %c0_10 = arith.constant 0 : index
    %c0_11 = arith.constant 0 : index
    %26 = vector.load %arg7[%c0_10, %c0_11] : memref<4x1xf32, #tpu.memory_space<vmem>>, vector<4x1xf32>
    tpu.vector_store %arg7[%c0_10, %c0_11], %25 {strides = array<i32>} : memref<4x1xf32, #tpu.memory_space<vmem>>, vector<4x1xf32>,
    %c0_12 = arith.constant 0 : index
    %c0_13 = arith.constant 0 : index
    %27 = vector.load %arg8[%c0_12, %c0_13] : memref<4x1xf32, #tpu.memory_space<vmem>>, vector<4x1xf32>
    %28 = vector.broadcast %21 : vector<1x256xf32> to vector<4x256xf32>
    %29 = arith.subf %28, %4 : vector<4x256xf32>
    %30 = arith.mulf %12, %29 : vector<4x256xf32>
    %cst_14 = arith.constant dense<0.000000e+00> : vector<4xf32>
    %31 = vector.multi_reduction <add>, %30, %cst_14 [1] : vector<4x256xf32> to vector<4xf32>
    %32 = vector.shape_cast %31 : vector<4xf32> to vector<4x1xf32>
    %33 = arith.addf %27, %32 : vector<4x1xf32>
    %c0_15 = arith.constant 0 : index
    %c0_16 = arith.constant 0 : index
    %34 = vector.load %arg8[%c0_15, %c0_16] : memref<4x1xf32, #tpu.memory_space<vmem>>, vector<4x1xf32>
    tpu.vector_store %arg8[%c0_15, %c0_16], %33 {strides = array<i32>} : memref<4x1xf32, #tpu.memory_space<vmem>>, vector<4x1xf32>,
    %c0_i32_17 = arith.constant 0 : i32
    %35 = arith.cmpi eq, %arg2, %c0_i32_17 : i32
    %36 = arith.extui %35 : i1 to i32
    %c0_i32_18 = arith.constant 0 : i32
    %37 = arith.cmpi ne, %36, %c0_i32_18 : i32
    scf.if %37 {
      %c0_19 = arith.constant 0 : index
      %c0_20 = arith.constant 0 : index
      %38 = vector.load %arg7[%c0_19, %c0_20] : memref<4x1xf32, #tpu.memory_space<vmem>>, vector<4x1xf32>
      %c0_21 = arith.constant 0 : index
      %c0_22 = arith.constant 0 : index
      %c0_23 = arith.constant 0 : index
      %c0_24 = arith.constant 0 : index
      %39 = vector.load %arg5[%c0_21, %c0_22, %c0_23, %c0_24] : memref<1x1x4x1xf32, #tpu.memory_space<vmem>>, vector<1x1x4x1xf32>
      %40 = vector.shape_cast %39 : vector<1x1x4x1xf32> to vector<4x1xf32>
      %41 = vector.shape_cast %38 : vector<4x1xf32> to vector<1x1x4x1xf32>
      tpu.vector_store %arg5[%c0_21, %c0_22, %c0_23, %c0_24], %41 {strides = array<i32>} : memref<1x1x4x1xf32, #tpu.memory_space<vmem>>, vector<1x1x4x1xf32>,
      %c0_25 = arith.constant 0 : index
      %c0_26 = arith.constant 0 : index
      %42 = vector.load %arg8[%c0_25, %c0_26] : memref<4x1xf32, #tpu.memory_space<vmem>>, vector<4x1xf32>
      %c0_27 = arith.constant 0 : index
      %c0_28 = arith.constant 0 : index
      %c0_29 = arith.constant 0 : index
      %c0_30 = arith.constant 0 : index
      %43 = vector.load %arg6[%c0_27, %c0_28, %c0_29, %c0_30] : memref<1x1x4x1xf32, #tpu.memory_space<vmem>>, vector<1x1x4x1xf32>
      %44 = vector.shape_cast %43 : vector<1x1x4x1xf32> to vector<4x1xf32>
      %45 = vector.shape_cast %42 : vector<4x1xf32> to vector<1x1x4x1xf32>
      tpu.vector_store %arg6[%c0_27, %c0_28, %c0_29, %c0_30], %45 {strides = array<i32>} : memref<1x1x4x1xf32, #tpu.memory_space<vmem>>, vector<1x1x4x1xf32>,
    } else {
    }
    return
  }
  func.func @transform_0(%arg0: i32, %arg1: i32, %arg2: i32) -> (i32, i32, i32) {
    %c1_i32 = arith.constant 1 : i32
    %0 = arith.muli %arg0, %c1_i32 : i32
    %1 = arith.addi %0, %arg2 : i32
    %c0_i32 = arith.constant 0 : i32
    %c0_i32_0 = arith.constant 0 : i32
    return %arg1, %c0_i32, %1 : i32, i32, i32
  }
  func.func @transform_1(%arg0: i32, %arg1: i32, %arg2: i32) -> (i32, i32, i32) {
    %c1_i32 = arith.constant 1 : i32
    %0 = arith.muli %arg0, %c1_i32 : i32
    %1 = arith.addi %0, %arg2 : i32
    %c0_i32 = arith.constant 0 : i32
    %c0_i32_0 = arith.constant 0 : i32
    return %arg1, %c0_i32, %1 : i32, i32, i32
  }
  func.func @transform_2(%arg0: i32, %arg1: i32, %arg2: i32) -> (i32, i32, i32, i32) {
    %c0_i32 = arith.constant 0 : i32
    %c0_i32_0 = arith.constant 0 : i32
    %c0_i32_1 = arith.constant 0 : i32
    return %arg0, %arg1, %c0_i32, %c0_i32_0 : i32, i32, i32, i32
  }
  func.func @transform_3(%arg0: i32, %arg1: i32, %arg2: i32) -> (i32, i32, i32, i32) {
    %c0_i32 = arith.constant 0 : i32
    %c0_i32_0 = arith.constant 0 : i32
    %c0_i32_1 = arith.constant 0 : i32
    return %arg0, %arg1, %c0_i32, %c0_i32_0 : i32, i32, i32, i32
  }
}

</mosaic_0001>

<llo_original>
// kernel: tpu_custom_call.1
$region0: #{tpu_custom_call.1}
  #allocation0 [shape = 'u32[]', space=smem, size = 0x4, offset = 0x4, fixed_abs, tag = 'smem constant byte address 0x4 - core index']
  #allocation1 [shape = 'u32[144,128]{1,0:T(1,128)}', space=vmem, size = 0x12000, scoped, tag = 'internal scratch']
  #allocation2 [shape = 'f32[4,1]{1,0:T(4,128)}', space=vmem, size = 0x800, scoped, tag = 'scratch operand']
  #allocation3 [shape = 'f32[4,1]{1,0:T(4,128)}', space=vmem, size = 0x800, scoped, tag = 'scratch operand']
  %s0 = inlined_call_operand.hbm [shape: f32[2,4,256], index: 0, kind: input, shape index: {}]
  %s1 = inlined_call_operand.hbm [shape: s32[2,1,256], index: 1, kind: input, shape index: {}]
  %s2 = inlined_call_operand.vmem [shape: f32[1,2,4,1], index: 2, kind: output, shape index: {0}]
  %s3 = inlined_call_operand.vmem [shape: f32[1,2,4,1], index: 3, kind: output, shape index: {1}]
  %4 = xla_tuple %s2, %s3
  %s5 = sld [smem:[#allocation0]]
  $region65: #{tpu_custom_call.1} parent=0
    _
  %s7 = ssub.s32 1, %s5
  %s8 = scalar_select 0, %s7, %s5
  $region1: #{tpu_custom_call.1} parent=0
    #allocation4 [shape = 'u8[8192]{0}', space=vmem, size = 0x2000, scoped, tag = 'input window, operand 0']
    #allocation5 [shape = 's32[2]{0}', space=sflag, size = 0x8, scoped, tag = 'scoped memory for tpu_custom_call.1']
    #allocation6 [shape = 'u8[2048]{0}', space=vmem, size = 0x800, scoped, tag = 'input window, operand 1']
    #allocation7 [shape = 's32[2]{0}', space=sflag, size = 0x8, scoped, tag = 'scoped memory for tpu_custom_call.1']
    %9 = vsyncpa [#allocation5], 0
    %s10 = scalar_lea.sflag [#allocation5], 1
    %11 = vsyncpa %s10, 0
    %12 = vsyncpa [#allocation7], 0
    %s13 = scalar_lea.sflag [#allocation7], 1
    %14 = vsyncpa %s13, 0
    loop: start=0, step=1, limit=4
    $region2: #{tpu_custom_call.1} parent=1 // loop_pre_header
      _
    $region3: #{tpu_custom_call.1} parent=1 // loop_header
      %s16 = sphi 0, %s20
      %p17 = scmp.ge.s32.totalorder %s16, 4
      %s23 = sphi 0, %s42
      %s24 = sphi 0, %s38
      %s25 = sphi 0, %s34
      %s26 = sphi 0, %s23
      %s27 = sphi 0, %s24
      %s28 = sphi 0, %s25
      %s29 = sphi 0, %s26
      %s30 = sphi 0, %s27
      %s31 = sphi 0, %s28
      %s49 = sphi 0, %s51
      %s52 = sphi 0, %s49
      %s53 = sphi 0, %s52
      %s69 = sphi 0, %s53
      %s79 = sphi 0, %s81
      %s82 = sphi 0, %s79
      %s83 = sphi 0, %s82
      %s99 = sphi 0, %s83
      %s107 = sphi 0, %s109
      %s110 = sphi 0, %s107
      %s111 = sphi 0, %s110
      %s127 = sphi 0, %s111
      %s135 = sphi 0, %s137
      %s138 = sphi 0, %s135
      %s139 = sphi 0, %s138
      %s155 = sphi 0, %s139
    $region4: #{tpu_custom_call.1} parent=1 // loop_header_branch
      %19 = sbr.rel (%p17) target = $region8
    $region5: #{tpu_custom_call.1} parent=1 // loop_body
      %s21 = ssub.s32 %s16, 1
      %s22 = ssub.s32 %s16, 2
      %s32 = sadd.s32 1, %s25
      %p33 = scmp.ge.s32.totalorder %s32, 1
      %s34 = scalar_select %p33, 0, %s32
      %s35 = sadd.s32 1, %s24
      %s36 = scalar_select %p33, %s35, %s24
      %p37 = scmp.ge.s32.totalorder %s36, 2
      %s38 = scalar_select %p37, 0, %s36
      %s39 = sadd.s32 1, %s23
      %s40 = scalar_select %p37, %s39, %s23
      %p41 = scmp.ge.s32.totalorder %s40, 1
      %s42 = scalar_select %p41, 0, %s40
      %s43 = sadd.s32 %s23, %s25
      %s44 = sadd.s32 %s42, %s34
      %s45 = ssub.s32 %s24, %s38
      %s46 = ssub.s32 %s43, %s44
      %s47 = sor.u32 %s45, %s46
      %p48 = scmp.eq.s32.totalorder %s47, 0
      %s50 = sadd.s32 %s49, 1
      %s51 = scalar_select %p48, %s49, %s50
      %p54 = pneg %p48
      %p55 = scmp.eq.s32.totalorder %s16, 1
      %p56 = por %p54, %p55
      %p57 = scmp.ne.s32.totalorder %s49, %s52
      %p58 = scmp.eq.s32.totalorder %s16, 0
      %p59 = por %p57, %p58
      %p60 = scmp.ne.s32.totalorder %s49, %s52
      %p61 = scmp.eq.s32.totalorder %s21, 1
      %p62 = por %p60, %p61
      %p63 = scmp.ne.s32.totalorder %s52, %s53
      %p64 = scmp.eq.s32.totalorder %s21, 0
      %p65 = por %p63, %p64
      %p66 = scmp.ne.s32.totalorder %s52, %s53
      %p67 = scmp.eq.s32.totalorder %s22, 1
      %p68 = por %p66, %p67
      %p70 = scmp.ne.s32.totalorder %s53, %s69
      %p71 = scmp.eq.s32.totalorder %s22, 0
      %p72 = por %p70, %p71
      %s73 = sadd.s32 %s23, %s25
      %s74 = sadd.s32 %s42, %s34
      %s75 = ssub.s32 %s24, %s38
      %s76 = ssub.s32 %s73, %s74
      %s77 = sor.u32 %s75, %s76
      %p78 = scmp.eq.s32.totalorder %s77, 0
      %s80 = sadd.s32 %s79, 1
      %s81 = scalar_select %p78, %s79, %s80
      %p84 = pneg %p78
      %p85 = scmp.eq.s32.totalorder %s16, 1
      %p86 = por %p84, %p85
      %p87 = scmp.ne.s32.totalorder %s79, %s82
      %p88 = scmp.eq.s32.totalorder %s16, 0
      %p89 = por %p87, %p88
      %p90 = scmp.ne.s32.totalorder %s79, %s82
      %p91 = scmp.eq.s32.totalorder %s21, 1
      %p92 = por %p90, %p91
      %p93 = scmp.ne.s32.totalorder %s82, %s83
      %p94 = scmp.eq.s32.totalorder %s21, 0
      %p95 = por %p93, %p94
      %p96 = scmp.ne.s32.totalorder %s82, %s83
      %p97 = scmp.eq.s32.totalorder %s22, 1
      %p98 = por %p96, %p97
      %p100 = scmp.ne.s32.totalorder %s83, %s99
      %p101 = scmp.eq.s32.totalorder %s22, 0
      %p102 = por %p100, %p101
      %s103 = ssub.s32 %s23, %s42
      %s104 = ssub.s32 %s24, %s38
      %s105 = sor.u32 %s103, %s104
      %p106 = scmp.eq.s32.totalorder %s105, 0
      %s108 = sadd.s32 %s107, 1
      %s109 = scalar_select %p106, %s107, %s108
      %p112 = pneg %p106
      %p113 = scmp.eq.s32.totalorder %s16, 1
      %p114 = por %p112, %p113
      %p115 = scmp.ne.s32.totalorder %s107, %s110
      %p116 = scmp.eq.s32.totalorder %s16, 0
      %p117 = por %p115, %p116
      %p118 = scmp.ne.s32.totalorder %s107, %s110
      %p119 = scmp.eq.s32.totalorder %s21, 1
      %p120 = por %p118, %p119
      %p121 = scmp.ne.s32.totalorder %s110, %s111
      %p122 = scmp.eq.s32.totalorder %s21, 0
      %p123 = por %p121, %p122
      %p124 = scmp.ne.s32.totalorder %s110, %s111
      %p125 = scmp.eq.s32.totalorder %s22, 1
      %p126 = por %p124, %p125
      %p128 = scmp.ne.s32.totalorder %s111, %s127
      %p129 = scmp.eq.s32.totalorder %s22, 0
      %p130 = por %p128, %p129
      %s131 = ssub.s32 %s23, %s42
      %s132 = ssub.s32 %s24, %s38
      %s133 = sor.u32 %s131, %s132
      %p134 = scmp.eq.s32.totalorder %s133, 0
      %s136 = sadd.s32 %s135, 1
      %s137 = scalar_select %p134, %s135, %s136
      %p140 = pneg %p134
      %p141 = scmp.eq.s32.totalorder %s16, 1
      %p142 = por %p140, %p141
      %p143 = scmp.ne.s32.totalorder %s135, %s138
      %p144 = scmp.eq.s32.totalorder %s16, 0
      %p145 = por %p143, %p144
      %p146 = scmp.ne.s32.totalorder %s135, %s138
      %p147 = scmp.eq.s32.totalorder %s21, 1
      %p148 = por %p146, %p147
      %p149 = scmp.ne.s32.totalorder %s138, %s139
      %p150 = scmp.eq.s32.totalorder %s21, 0
      %p151 = por %p149, %p150
      %p152 = scmp.ne.s32.totalorder %s138, %s139
      %p153 = scmp.eq.s32.totalorder %s22, 1
      %p154 = por %p152, %p153
      %p156 = scmp.ne.s32.totalorder %s139, %s155
      %p157 = scmp.eq.s32.totalorder %s22, 0
      %p158 = por %p156, %p157
      %p159 = scmp.le.s32.totalorder 1, %s16
      %p160 = scmp.lt.s32.totalorder %s16, 3
      %p161 = pnand %p159, %p160
      %p162 = pneg %p161
      // Predicated region
      $region9: #{tpu_custom_call.1} parent=5 // pred_check
        _
      $region10: #{tpu_custom_call.1} parent=5 // pred_check_branch
        %164 = sbr.rel (%p161) target = $region12
      $region11: #{tpu_custom_call.1} parent=5 // pred_region
        %s165 = ssub.s32 %s16, 1
      $region12: #{tpu_custom_call.1} parent=5 // pred_fallthru
        _
      %p166 = scmp.lt.s32.totalorder %s16, 2
      // Predicated region
      $region13: #{tpu_custom_call.1} parent=5 // pred_check
        %p167 = pneg %p166
      $region14: #{tpu_custom_call.1} parent=5 // pred_check_branch
        %169 = sbr.rel (%p167) target = $region16
      $region15: #{tpu_custom_call.1} parent=5 // pred_region
        // Predicated region
        $region17: #{tpu_custom_call.1} parent=15 // pred_check
          %p170 = pneg %p59
        $region18: #{tpu_custom_call.1} parent=15 // pred_check_branch
          %172 = sbr.rel (%p170) target = $region20
        $region19: #{tpu_custom_call.1} parent=15 // pred_region
          %s173 = sand.u32 %s49, 1
          %s174 = scalar_lea.sflag [#allocation5], %s173
          %s175 = sand.u32 %s49, 1
          %s176 = smul.addr %s175, 8
          %s177 = scalar_lea.vmem [#allocation4], %s176
          %s178 = sadd.s32 %s23, %s25
          %s179 = smul.u32 2, %s178
          %s181 = ssub.s32 128, 128
          %182 = vsyncadd %s174, %s181
          %s183 = smul.addr %s24, 2
          %s184 = sadd.s32 %s179, %s183
          %s185 = smul.addr %s184, 64
          %s186 = scalar_lea.hbm %s0, %s185
          %s188 = sshll.u32 %s177, 4
          %s189 = int_to_ptr.vmem [resolvable:$true] %s188
          %191 = dma.hbm_to_vmem [thread:$0]  %s186, 128, %s189, %s174
        $region20: #{tpu_custom_call.1} parent=15 // pred_fallthru
          _
        // Predicated region
        $region21: #{tpu_custom_call.1} parent=15 // pred_check
          %p192 = pneg %p89
        $region22: #{tpu_custom_call.1} parent=15 // pred_check_branch
          %194 = sbr.rel (%p192) target = $region24
        $region23: #{tpu_custom_call.1} parent=15 // pred_region
          %s195 = sand.u32 %s79, 1
          %s196 = scalar_lea.sflag [#allocation7], %s195
          %s197 = sand.u32 %s79, 1
          %s198 = smul.addr %s197, 2
          %s199 = scalar_lea.vmem [#allocation6], %s198
          %s200 = sadd.s32 %s23, %s25
          %s201 = smul.u32 2, %s200
          %s203 = ssub.s32 32, 32
          %204 = vsyncadd %s196, %s203
          %s205 = smul.addr %s24, 2
          %s206 = sadd.s32 %s201, %s205
          %s207 = smul.addr %s206, 16
          %s208 = scalar_lea.hbm %s1, %s207
          %s210 = sshll.u32 %s199, 4
          %s211 = int_to_ptr.vmem [resolvable:$true] %s210
          %213 = dma.hbm_to_vmem [thread:$0]  %s208, 32, %s211, %s196
        $region24: #{tpu_custom_call.1} parent=15 // pred_fallthru
          _
      $region16: #{tpu_custom_call.1} parent=5 // pred_fallthru
        _
      %p214 = scmp.le.s32.totalorder 1, %s16
      %p215 = scmp.lt.s32.totalorder %s16, 3
      %p216 = pnand %p214, %p215
      %p217 = pneg %p216
      // Predicated region
      $region25: #{tpu_custom_call.1} parent=5 // pred_check
        _
      $region26: #{tpu_custom_call.1} parent=5 // pred_check_branch
        %219 = sbr.rel (%p216) target = $region28
      $region27: #{tpu_custom_call.1} parent=5 // pred_region
        %s220 = ssub.s32 %s16, 1
        %s221 = sand.u32 %s52, 1
        %s222 = scalar_lea.sflag [#allocation5], %s221
        %s223 = sand.u32 %s52, 1
        %s224 = smul.addr %s223, 8
        %s225 = scalar_lea.vmem [#allocation4], %s224
        // Predicated region
        $region29: #{tpu_custom_call.1} parent=27 // pred_check
          %p226 = pneg %p65
        $region30: #{tpu_custom_call.1} parent=27 // pred_check_branch
          %228 = sbr.rel (%p226) target = $region32
        $region31: #{tpu_custom_call.1} parent=27 // pred_region
          %229 = dma.done %s222, 128
        $region32: #{tpu_custom_call.1} parent=27 // pred_fallthru
          _
        %s230 = sand.u32 %s82, 1
        %s231 = scalar_lea.sflag [#allocation7], %s230
        %s232 = sand.u32 %s82, 1
        %s233 = smul.addr %s232, 2
        %s234 = scalar_lea.vmem [#allocation6], %s233
        // Predicated region
        $region33: #{tpu_custom_call.1} parent=27 // pred_check
          %p235 = pneg %p95
        $region34: #{tpu_custom_call.1} parent=27 // pred_check_branch
          %237 = sbr.rel (%p235) target = $region36
        $region35: #{tpu_custom_call.1} parent=27 // pred_region
          %238 = dma.done %s231, 32
        $region36: #{tpu_custom_call.1} parent=27 // pred_fallthru
          _
        %s239 = sand.u32 %s52, 1
        %s240 = scalar_lea.sflag [#allocation5], %s239
        %s241 = sand.u32 %s52, 1
        %s242 = smul.addr %s241, 8
        %s243 = scalar_lea.vmem [#allocation4], %s242
        %p244 = pneg %p65
        %p245 = pneg %p62
        %s246 = sand.u32 %s82, 1
        %s247 = scalar_lea.sflag [#allocation7], %s246
        %s248 = sand.u32 %s82, 1
        %s249 = smul.addr %s248, 2
        %s250 = scalar_lea.vmem [#allocation6], %s249
        %p251 = pneg %p95
        %p252 = pneg %p92
        %p253 = pneg %p123
        %p254 = pneg %p120
        %p255 = scmp.lt.s32.totalorder %s26, 0
        %s256 = scalar_select %p255, %s26, 0
        %p257 = scmp.lt.s32.totalorder %s27, 1
        %s258 = scalar_select %p257, %s27, 1
        %s259 = smul.addr %s256, 2
        %s260 = sadd.s32 %s258, %s259
        %s261 = smul.addr %s260, 4
        %s262 = scalar_lea.vmem %s2, %s261
        %p263 = pneg %p151
        %p264 = pneg %p148
        %p265 = scmp.lt.s32.totalorder %s26, 0
        %s266 = scalar_select %p265, %s26, 0
        %p267 = scmp.lt.s32.totalorder %s27, 1
        %s268 = scalar_select %p267, %s27, 1
        %s269 = smul.addr %s266, 2
        %s270 = sadd.s32 %s268, %s269
        %s271 = smul.addr %s270, 4
        %s272 = scalar_lea.vmem %s3, %s271
        %s273 = sadd.s32 %s26, %s28
        %s274 = smul.u32 2, %s273
        %s275 = sadd.s32 %s26, %s28
        %s276 = smul.u32 2, %s275
        %p277 = scmp.lt.s32.totalorder %s26, 0
        %s278 = scalar_select %p277, %s26, 0
        %p279 = scmp.lt.s32.totalorder %s27, 1
        %s280 = scalar_select %p279, %s27, 1
        %s281 = smul.addr %s278, 2
        %s282 = sadd.s32 %s280, %s281
        %s283 = smul.addr %s282, 4
        %s284 = scalar_lea.vmem %s2, %s283
        %p285 = scmp.lt.s32.totalorder %s26, 0
        %s286 = scalar_select %p285, %s26, 0
        %p287 = scmp.lt.s32.totalorder %s27, 1
        %s288 = scalar_select %p287, %s27, 1
        %s289 = smul.addr %s286, 2
        %s290 = sadd.s32 %s288, %s289
        %s291 = smul.addr %s290, 4
        %s292 = scalar_lea.vmem %s3, %s291
        %p293 = scmp.eq.s32.totalorder %s28, 0
        // Predicated region
        $region37: #{tpu_custom_call.1} parent=27 // pred_check
          %p294 = pneg %p293
        $region38: #{tpu_custom_call.1} parent=27 // pred_check_branch
          %296 = sbr.rel (%p294) target = $region40
        $region39: #{tpu_custom_call.1} parent=27 // pred_region
          %vm297 = vcmask 3072
          %298 = vst.msk [vmem:[#allocation2] sm:$0xf] %vm297, 0.0
          %299 = vst.msk [vmem:[#allocation3] sm:$0xf] %vm297, 0.0
        $region40: #{tpu_custom_call.1} parent=27 // pred_fallthru
          _
        %v300 = vld [vmem:[%s225] sm:$0xff]
        %v301 = vld [vmem:[%s234] sm:$0x3]
        %v302 = vlaneseq
        %v303 = vshrl.u32 %v302, 7
        %v304 = vlaneseq
        %v305 = vshrl.u32 %v304, 7
        %v306 = vsub.s32 0, %v305
        %v307 = vrot.slane %v301, %v306
        %v308 = vlaneseq
        %v309 = vshrl.u32 %v308, 7
        %v310 = vsub.s32 1, %v309
        %v311 = vrot.slane %v301, %v310
        %vm312 = vcmp.eq.s32.totalorder %v303, %v307
        %vm313 = vcmp.eq.s32.totalorder %v303, %v311
        %v314 = vsel %vm312, 1, 0
        %v315 = vsel %vm313, 1, 0
        %v316 = vcvt.s32.f32 %v314
        %v317 = vcvt.s32.f32 %v315
        %v319 = vcombine.high %v300, %v300
        %vm321 = vcmask 1043456
        %v322 = vsel %vm321, %v300, -inf
        %v323 = vrot.slane %v322, 4
        %v324 = vmax.f32 %v322, %v323
        %v325 = vrot.slane %v324, 2
        %v326 = vmax.f32 %v324, %v325
        %v327 = vrot.slane %v326, 1
        %v328 = vmax.f32 %v326, %v327
        %v329 = vsel %vm321, %v319, -inf
        %v330 = vrot.slane %v329, 4
        %v331 = vmax.f32 %v329, %v330
        %v332 = vrot.slane %v331, 2
        %v333 = vmax.f32 %v331, %v332
        %v334 = vrot.slane %v333, 1
        %v335 = vmax.f32 %v333, %v334
        %v338 = vcombine.low %v328, %v335
        %v340 = vsub.f32 %v300, %v338
        %v341 = vmul.f32 %v340, 1.442695
        %v342 = vpow.pop %v341
        %v344 = vcombine.high %v342, %v342
        %v346 = vsel %vm321, %v342, 0.0
        %v347 = vrot.slane %v346, 4
        %v348 = vadd.f32 %v346, %v347
        %v349 = vrot.slane %v348, 2
        %v350 = vadd.f32 %v348, %v349
        %v351 = vrot.slane %v350, 1
        %v352 = vadd.f32 %v350, %v351
        %v353 = vsel %vm321, %v344, 0.0
        %v354 = vrot.slane %v353, 4
        %v355 = vadd.f32 %v353, %v354
        %v356 = vrot.slane %v355, 2
        %v357 = vadd.f32 %v355, %v356
        %v358 = vrot.slane %v357, 1
        %v359 = vadd.f32 %v357, %v358
        %v360 = vlog2.pop %v352
        %v361 = vmul.f32 %v360, 0.6931472
        %v362 = vlog2.pop %v359
        %v363 = vmul.f32 %v362, 0.6931472
        %v364 = vadd.f32 %v328, %v361
        %v365 = vadd.f32 %v335, %v363
        %v366 = vld [vmem:[#allocation2] sm:$0xf]
        %v367 = vsel %vm321, %v316, 0.0
        %v368 = vsel %vm321, %v317, 0.0
        %v369 = vadd.f32 %v367, %v368
        %370 = vadd.xlane.f32.xlu0 %v369
        %v371 = vpop.xlane.xlu0 %370
        %v372 = vadd.f32 %v366, %v371
        %vm373 = vcmask 3072
        %374 = vst.msk [vmem:[#allocation2] sm:$0xf] %vm373, %v372
        %v375 = vld [vmem:[#allocation3] sm:$0xf]
        %v376 = vsub.f32 %v364, %v300
        %v377 = vsub.f32 %v365, %v319
        %v378 = vmul.f32 %v316, %v376
        %v379 = vmul.f32 %v317, %v377
        %v380 = vsel %vm321, %v378, 0.0
        %v381 = vsel %vm321, %v379, 0.0
        %v382 = vadd.f32 %v380, %v381
        %383 = vadd.xlane.f32.xlu0 %v382
        %v384 = vpop.xlane.xlu0 %383
        %v385 = vadd.f32 %v375, %v384
        %386 = vst.msk [vmem:[#allocation3] sm:$0xf] %vm373, %v385
        // Predicated region
        $region41: #{tpu_custom_call.1} parent=27 // pred_check
          %p387 = pneg %p293
        $region42: #{tpu_custom_call.1} parent=27 // pred_check_branch
          %389 = sbr.rel (%p387) target = $region44
        $region43: #{tpu_custom_call.1} parent=27 // pred_region
          %v390 = vld [vmem:[#allocation2] sm:$0xf]
          %391 = vst.msk [vmem:[%s284] sm:$0xf] %vm373, %v390
          %v392 = vld [vmem:[#allocation3] sm:$0xf]
          %393 = vst.msk [vmem:[%s292] sm:$0xf] %vm373, %v392
        $region44: #{tpu_custom_call.1} parent=27 // pred_fallthru
          _
        %p394 = scmp.lt.s32.totalorder %s26, 0
        %s395 = scalar_select %p394, %s26, 0
        %p396 = scmp.lt.s32.totalorder %s27, 1
        %s397 = scalar_select %p396, %s27, 1
        %s398 = smul.addr %s395, 2
        %s399 = sadd.s32 %s397, %s398
        %s400 = smul.addr %s399, 4
        %s401 = scalar_lea.vmem %s2, %s400
        %p402 = scmp.lt.s32.totalorder %s26, 0
        %s403 = scalar_select %p402, %s26, 0
        %p404 = scmp.lt.s32.totalorder %s27, 1
        %s405 = scalar_select %p404, %s27, 1
        %s406 = smul.addr %s403, 2
        %s407 = sadd.s32 %s405, %s406
        %s408 = smul.addr %s407, 4
        %s409 = scalar_lea.vmem %s3, %s408
        // Predicated region
        $region45: #{tpu_custom_call.1} parent=27 // pred_check
          %p410 = pneg %p120
        $region46: #{tpu_custom_call.1} parent=27 // pred_check_branch
          %412 = sbr.rel (%p410) target = $region48
        $region47: #{tpu_custom_call.1} parent=27 // pred_region
          _
        $region48: #{tpu_custom_call.1} parent=27 // pred_fallthru
          _
        // Predicated region
        $region49: #{tpu_custom_call.1} parent=27 // pred_check
          %p413 = pneg %p148
        $region50: #{tpu_custom_call.1} parent=27 // pred_check_branch
          %415 = sbr.rel (%p413) target = $region52
        $region51: #{tpu_custom_call.1} parent=27 // pred_region
          _
        $region52: #{tpu_custom_call.1} parent=27 // pred_fallthru
          _
      $region28: #{tpu_custom_call.1} parent=5 // pred_fallthru
        _
      %p416 = scmp.le.s32.totalorder 2, %s16
      // Predicated region
      $region53: #{tpu_custom_call.1} parent=5 // pred_check
        %p417 = pneg %p416
      $region54: #{tpu_custom_call.1} parent=5 // pred_check_branch
        %419 = sbr.rel (%p417) target = $region56
      $region55: #{tpu_custom_call.1} parent=5 // pred_region
        %s420 = ssub.s32 %s16, 2
        // Predicated region
        $region57: #{tpu_custom_call.1} parent=55 // pred_check
          %p421 = pneg %p126
        $region58: #{tpu_custom_call.1} parent=55 // pred_check_branch
          %423 = sbr.rel (%p421) target = $region60
        $region59: #{tpu_custom_call.1} parent=55 // pred_region
          %p424 = scmp.lt.s32.totalorder %s29, 0
          %s425 = scalar_select %p424, %s29, 0
          %p426 = scmp.lt.s32.totalorder %s30, 1
          %s427 = scalar_select %p426, %s30, 1
          %s428 = smul.addr %s425, 2
          %s429 = sadd.s32 %s427, %s428
          %s430 = smul.addr %s429, 4
          %s431 = scalar_lea.vmem %s2, %s430
        $region60: #{tpu_custom_call.1} parent=55 // pred_fallthru
          _
        // Predicated region
        $region61: #{tpu_custom_call.1} parent=55 // pred_check
          %p432 = pneg %p154
        $region62: #{tpu_custom_call.1} parent=55 // pred_check_branch
          %434 = sbr.rel (%p432) target = $region64
        $region63: #{tpu_custom_call.1} parent=55 // pred_region
          %p435 = scmp.lt.s32.totalorder %s29, 0
          %s436 = scalar_select %p435, %s29, 0
          %p437 = scmp.lt.s32.totalorder %s30, 1
          %s438 = scalar_select %p437, %s30, 1
          %s439 = smul.addr %s436, 2
          %s440 = sadd.s32 %s438, %s439
          %s441 = smul.addr %s440, 4
          %s442 = scalar_lea.vmem %s3, %s441
        $region64: #{tpu_custom_call.1} parent=55 // pred_fallthru
          _
      $region56: #{tpu_custom_call.1} parent=5 // pred_fallthru
        _
    $region6: #{tpu_custom_call.1} parent=1 // loop_footer
      %s20 = sadd.s32 1, %s16
    $region7: #{tpu_custom_call.1} parent=1 // loop_footer_branch
      %15 = sbr.rel target = $region3
    $region8: #{tpu_custom_call.1} parent=1 // loop_exit
      _
    %443 = vsyncpa [#allocation5], 1
    %s444 = scalar_lea.sflag [#allocation5], 1
    %445 = vsyncpa %s444, 1
    %446 = vsyncpa [#allocation7], 1
    %s447 = scalar_lea.sflag [#allocation7], 1
    %448 = vsyncpa %s447, 1

</llo_original>
